<compile_context>
chip_gen: v5e
topology: v5e:2x2
jax: 0.10.0
libtpu: 0.0.40
codegen_flags: <defaults>
</compile_context>

<pallas_src>
import functools

import jax
import jax.numpy as jnp
from jax.experimental import pallas as pl
from jax.experimental.pallas import tpu as pltpu


def _pick_l_tile(l_out):
    """Largest 128-multiple tile that divides L_out (else the full length)."""
    for cand in (1024, 512, 384, 256, 128):
        if l_out % cand == 0:
            return cand
    return l_out


def _vmem_limit_bytes(per_step_bytes):
    # double-buffered blocks + headroom, clipped to what v7x (64 MiB/TC) allows.
    return int(min(max(2 * per_step_bytes + (16 << 20), 32 << 20), 64 << 20))


# ---------------------------------------------------------------------------
# Kernel 1: dilated conv (single im2col matmul) + 1x1 conv + bias, plus BN
# partial statistics (per-sample, per-channel sum and sum-of-squares).
# ---------------------------------------------------------------------------
def conv_stats_kernel(x_ref, w1f_ref, w2t_ref, b2_ref, y_ref, stats_ref, *,
                      k, dilation, l_out):
    """One grid step == one batch sample.

    x_ref    : (1, Cin, Lp)       padded input, NCL (L on lanes)
    w1f_ref  : (Cout, k*Cin)      conv taps flattened into one contraction
    w2t_ref  : (Cout, Cout)       1x1 conv weight, (out, in)
    b2_ref   : (Cout, 1)          1x1 conv bias
    y_ref    : (1, Cout, L_out)   pre-BN activation (f32)
    stats_ref: (1, Cout, 2)       [..., 0] = sum over L, [..., 1] = sum of squares
    """
    # im2col slab, built once: row (t*Cin + ci) = x[ci, t*d : t*d + L_out].
    # Each tap is a *static* lane-offset window read directly from the ref.
    xcol = jnp.concatenate(
        [x_ref[0, :, pl.ds(t * dilation, l_out)] for t in range(k)], axis=0)

    # k-tap dilated conv as ONE MXU matmul, K = k*Cin (native-dtype operands,
    # f32 accumulation).
    y = jnp.dot(w1f_ref[...], xcol, preferred_element_type=jnp.float32)  # (Cout, L_out)

    # 1x1 conv + bias (second MXU matmul, K = Cout).
    y = jnp.dot(w2t_ref[...], y, preferred_element_type=jnp.float32)
    y = y + b2_ref[...].astype(jnp.float32)

    y_ref[...] = y[None].astype(y_ref.dtype)

    # One-pass BN partials: per-channel sum / sum-of-squares over L (lane reduce).
    s = jnp.sum(y, axis=1, keepdims=True)                                 # (Cout, 1)
    ss = jnp.sum(y * y, axis=1, keepdims=True)                            # (Cout, 1)
    stats_ref[...] = jnp.concatenate([s, ss], axis=1)[None].astype(stats_ref.dtype)


# ---------------------------------------------------------------------------
# Kernel 2: fused BatchNorm affine + ReLU.  Dropout(p=0.0) is the identity.
# ---------------------------------------------------------------------------
def bn_relu_kernel(y_ref, scale_ref, shift_ref, o_ref):
    y = y_ref[...].astype(jnp.float32)          # (1, Cout, tL)
    scale = scale_ref[...][None]                # (1, Cout, 1)
    shift = shift_ref[...][None]
    o_ref[...] = jnp.maximum(y * scale + shift, 0.0).astype(o_ref.dtype)


def conv_sub_block(x_ncl, w1, w2, b2, gamma, beta, *,
                   k=11, stride=1, dilation=1, eps=1e-5):
    """Forward pass of ConvSubBlock.  x_ncl: (N, Cin, L), like nn.Conv1d."""
    assert stride == 1  # TODO(synk): stride > 1 conv not implemented in this kernel.
    N, Cin, L = x_ncl.shape
    Cout = w1.shape[2]
    pad = dilation * (k - 1) // 2
    L_out = L + 2 * pad - dilation * (k - 1)                     # stride == 1
    Lp = L + 2 * pad

    # TODO(synk): fold this padding into the kernel via a halo-aware index_map /
    # manual DMA so the input is read from HBM exactly once.
    xp = jnp.pad(x_ncl, ((0, 0), (0, 0), (pad, pad)))            # (N, Cin, Lp)

    # Tiny one-time weight reshapes so the kernel sees MXU-friendly operands:
    #   w1 (k, Cin, Cout) -> (Cout, k*Cin) collapses the k taps into a single
    #   contraction; w2 (in, out) -> (out, in) for y2 = w2t @ y.
    w1f = jnp.transpose(w1.reshape(k * Cin, Cout))               # (Cout, k*Cin)
    w2t = jnp.transpose(w2)                                      # (Cout, Cout)
    b2c = b2.reshape(Cout, 1)

    in_b = jnp.dtype(x_ncl.dtype).itemsize
    w_b = jnp.dtype(w1.dtype).itemsize
    per_step1 = (Cin * Lp * in_b + Cout * k * Cin * w_b + Cout * Cout * w_b
                 + Cout * w_b + Cout * L_out * 4 + Cout * 2 * 4
                 + k * Cin * L_out * 4 + 2 * Cout * L_out * 4)

    y_f32, stats = pl.pallas_call(
        functools.partial(conv_stats_kernel, k=k, dilation=dilation, l_out=L_out),
        out_shape=(jax.ShapeDtypeStruct((N, Cout, L_out), jnp.float32),
                   jax.ShapeDtypeStruct((N, Cout, 2), jnp.float32)),
        grid_spec=pltpu.PrefetchScalarGridSpec(
            num_scalar_prefetch=0,
            grid=(N,),
            in_specs=[
                pl.BlockSpec((1, Cin, Lp), lambda n: (n, 0, 0)),
                pl.BlockSpec((Cout, k * Cin), lambda n: (0, 0)),
                pl.BlockSpec((Cout, Cout), lambda n: (0, 0)),
                pl.BlockSpec((Cout, 1), lambda n: (0, 0)),
            ],
            out_specs=[
                pl.BlockSpec((1, Cout, L_out), lambda n: (n, 0, 0)),
                pl.BlockSpec((1, Cout, 2), lambda n: (n, 0, 0)),
            ],
        ),
        compiler_params=pltpu.CompilerParams(
            dimension_semantics=("parallel",),
            vmem_limit_bytes=_vmem_limit_bytes(per_step1)),
    )(xp, w1f, w2t, b2c)

    # Fold the tiny (N, Cout, 2) partials into BN scale/shift (negligible XLA work).
    count = N * L_out
    total = jnp.sum(stats, axis=0)                               # (Cout, 2)
    mean = total[:, 0] / count
    # One-pass biased variance E[y^2] - mean^2 (training-mode BN); clamped at 0
    # to guard against cancellation.
    var = jnp.maximum(total[:, 1] / count - mean * mean, 0.0)
    scale = gamma.astype(jnp.float32) * jax.lax.rsqrt(var + eps)
    shift = beta.astype(jnp.float32) - mean * scale
    scale_c = scale.reshape(Cout, 1)
    shift_c = shift.reshape(Cout, 1)

    tL = _pick_l_tile(L_out)
    nL = L_out // tL
    out_b = jnp.dtype(x_ncl.dtype).itemsize
    per_step2 = Cout * tL * 4 + Cout * tL * out_b + 2 * Cout * 4

    out = pl.pallas_call(
        bn_relu_kernel,
        out_shape=jax.ShapeDtypeStruct((N, Cout, L_out), x_ncl.dtype),
        grid_spec=pltpu.PrefetchScalarGridSpec(
            num_scalar_prefetch=0,
            grid=(N, nL),
            in_specs=[
                pl.BlockSpec((1, Cout, tL), lambda n, j: (n, 0, j)),
                pl.BlockSpec((Cout, 1), lambda n, j: (0, 0)),
                pl.BlockSpec((Cout, 1), lambda n, j: (0, 0)),
            ],
            out_specs=pl.BlockSpec((1, Cout, tL), lambda n, j: (n, 0, j)),
        ),
        compiler_params=pltpu.CompilerParams(
            dimension_semantics=("parallel", "parallel"),
            vmem_limit_bytes=_vmem_limit_bytes(per_step2)),
    )(y_f32, scale_c, shift_c)

    return out                                                   # already NCL


def reference(x_ncl, w1, w2, b2, gamma, beta, *, k, dilation=1, eps=1e-5):
    """Pure-JAX reference mirroring the PyTorch forward (training-mode BN)."""
    pad = dilation * (k - 1) // 2
    w1_oik = jnp.transpose(w1, (2, 1, 0))                        # (Cout, Cin, k)
    y = jax.lax.conv_general_dilated(
        x_ncl, w1_oik, window_strides=(1,), padding=[(pad, pad)],
        rhs_dilation=(dilation,), dimension_numbers=("NCH", "OIH", "NCH"))
    y = jnp.einsum("ncl,co->nol", y, w2) + b2[None, :, None]     # 1x1 conv
    mean = jnp.mean(y, axis=(0, 2), keepdims=True)
    var = jnp.mean((y - mean) ** 2, axis=(0, 2), keepdims=True)
    y = (y - mean) / jnp.sqrt(var + eps)
    y = y * gamma[None, :, None] + beta[None, :, None]
    return jnp.maximum(y, 0.0)


if __name__ == "__main__":
    N, Cin, Cout, L, k = 2, 8, 16, 32, 11

    key = jax.random.PRNGKey(0)
    k1, k2, k3, k4, k5, k6 = jax.random.split(key, 6)
    x = jax.random.normal(k1, (N, Cin, L), jnp.float32)          # NCL, like Conv1d
    w1 = 0.1 * jax.random.normal(k2, (k, Cin, Cout), jnp.float32)
    w2 = 0.1 * jax.random.normal(k3, (Cout, Cout), jnp.float32)
    b2 = 0.1 * jax.random.normal(k4, (Cout,), jnp.float32)
    gamma = 1.0 + 0.1 * jax.random.normal(k5, (Cout,), jnp.float32)
    beta = 0.1 * jax.random.normal(k6, (Cout,), jnp.float32)

    out = conv_sub_block(x, w1, w2, b2, gamma, beta, k=k, stride=1, dilation=1)
    out = jax.block_until_ready(out)

    ref = reference(x, w1, w2, b2, gamma, beta, k=k, dilation=1)
    assert out.shape == (N, Cout, L), out.shape
    max_err = float(jnp.max(jnp.abs(out - ref)))
    if max_err < 1e-3:
        print("KERNEL_OK")
    else:
        print(f"MISMATCH max_err={max_err}")
</pallas_src>

<mosaic_0001>
module attributes {stable_mosaic.version = 11 : i64} {
  func.func @conv_stats_kernel(%arg0: i32, %arg1: memref<1x8x42xf32, #tpu.memory_space<vmem>>, %arg2: memref<16x88xf32, #tpu.memory_space<vmem>>, %arg3: memref<16x16xf32, #tpu.memory_space<vmem>>, %arg4: memref<16x1xf32, #tpu.memory_space<vmem>>, %arg5: memref<1x16x32xf32, #tpu.memory_space<vmem>>, %arg6: memref<1x16x2xf32, #tpu.memory_space<vmem>>) attributes {dimension_semantics = [#tpu.dimension_semantics<parallel>], iteration_bounds = array<i64: 2>, scalar_prefetch = 0 : i64, scratch_operands = 0 : i64, tpu.core_type = #tpu.core_type<tc>, window_params = [{transform_indices = @transform_0, window_bounds = array<i64: 1, 8, 42>}, {pipeline_mode = #tpu.pipeline_mode<synchronous>, transform_indices = @transform_1, window_bounds = array<i64: 16, 88>}, {pipeline_mode = #tpu.pipeline_mode<synchronous>, transform_indices = @transform_2, window_bounds = array<i64: 16, 16>}, {pipeline_mode = #tpu.pipeline_mode<synchronous>, transform_indices = @transform_3, window_bounds = array<i64: 16, 1>}, {transform_indices = @transform_4, window_bounds = array<i64: 1, 16, 32>}, {transform_indices = @transform_5, window_bounds = array<i64: 1, 16, 2>}]} {
    %c0 = arith.constant 0 : index
    %c0_0 = arith.constant 0 : index
    %c0_1 = arith.constant 0 : index
    %0 = vector.load %arg1[%c0, %c0_0, %c0_1] : memref<1x8x42xf32, #tpu.memory_space<vmem>>, vector<1x8x32xf32>
    %1 = vector.shape_cast %0 : vector<1x8x32xf32> to vector<8x32xf32>
    %c0_2 = arith.constant 0 : index
    %c0_3 = arith.constant 0 : index
    %c1 = arith.constant 1 : index
    %2 = vector.load %arg1[%c0_2, %c0_3, %c1] : memref<1x8x42xf32, #tpu.memory_space<vmem>>, vector<1x8x32xf32>
    %3 = vector.shape_cast %2 : vector<1x8x32xf32> to vector<8x32xf32>
    %c0_4 = arith.constant 0 : index
    %c0_5 = arith.constant 0 : index
    %c2 = arith.constant 2 : index
    %4 = vector.load %arg1[%c0_4, %c0_5, %c2] : memref<1x8x42xf32, #tpu.memory_space<vmem>>, vector<1x8x32xf32>
    %5 = vector.shape_cast %4 : vector<1x8x32xf32> to vector<8x32xf32>
    %c0_6 = arith.constant 0 : index
    %c0_7 = arith.constant 0 : index
    %c3 = arith.constant 3 : index
    %6 = vector.load %arg1[%c0_6, %c0_7, %c3] : memref<1x8x42xf32, #tpu.memory_space<vmem>>, vector<1x8x32xf32>
    %7 = vector.shape_cast %6 : vector<1x8x32xf32> to vector<8x32xf32>
    %c0_8 = arith.constant 0 : index
    %c0_9 = arith.constant 0 : index
    %c4 = arith.constant 4 : index
    %8 = vector.load %arg1[%c0_8, %c0_9, %c4] : memref<1x8x42xf32, #tpu.memory_space<vmem>>, vector<1x8x32xf32>
    %9 = vector.shape_cast %8 : vector<1x8x32xf32> to vector<8x32xf32>
    %c0_10 = arith.constant 0 : index
    %c0_11 = arith.constant 0 : index
    %c5 = arith.constant 5 : index
    %10 = vector.load %arg1[%c0_10, %c0_11, %c5] : memref<1x8x42xf32, #tpu.memory_space<vmem>>, vector<1x8x32xf32>
    %11 = vector.shape_cast %10 : vector<1x8x32xf32> to vector<8x32xf32>
    %c0_12 = arith.constant 0 : index
    %c0_13 = arith.constant 0 : index
    %c6 = arith.constant 6 : index
    %12 = vector.load %arg1[%c0_12, %c0_13, %c6] : memref<1x8x42xf32, #tpu.memory_space<vmem>>, vector<1x8x32xf32>
    %13 = vector.shape_cast %12 : vector<1x8x32xf32> to vector<8x32xf32>
    %c0_14 = arith.constant 0 : index
    %c0_15 = arith.constant 0 : index
    %c7 = arith.constant 7 : index
    %14 = vector.load %arg1[%c0_14, %c0_15, %c7] : memref<1x8x42xf32, #tpu.memory_space<vmem>>, vector<1x8x32xf32>
    %15 = vector.shape_cast %14 : vector<1x8x32xf32> to vector<8x32xf32>
    %c0_16 = arith.constant 0 : index
    %c0_17 = arith.constant 0 : index
    %c8 = arith.constant 8 : index
    %16 = vector.load %arg1[%c0_16, %c0_17, %c8] : memref<1x8x42xf32, #tpu.memory_space<vmem>>, vector<1x8x32xf32>
    %17 = vector.shape_cast %16 : vector<1x8x32xf32> to vector<8x32xf32>
    %c0_18 = arith.constant 0 : index
    %c0_19 = arith.constant 0 : index
    %c9 = arith.constant 9 : index
    %18 = vector.load %arg1[%c0_18, %c0_19, %c9] : memref<1x8x42xf32, #tpu.memory_space<vmem>>, vector<1x8x32xf32>
    %19 = vector.shape_cast %18 : vector<1x8x32xf32> to vector<8x32xf32>
    %c0_20 = arith.constant 0 : index
    %c0_21 = arith.constant 0 : index
    %c10 = arith.constant 10 : index
    %20 = vector.load %arg1[%c0_20, %c0_21, %c10] : memref<1x8x42xf32, #tpu.memory_space<vmem>>, vector<1x8x32xf32>
    %21 = vector.shape_cast %20 : vector<1x8x32xf32> to vector<8x32xf32>
    %22 = tpu.concatenate %1, %3, %5, %7, %9, %11, %13, %15, %17, %19, %21 in 0 : vector<8x32xf32>, vector<8x32xf32>, vector<8x32xf32>, vector<8x32xf32>, vector<8x32xf32>, vector<8x32xf32>, vector<8x32xf32>, vector<8x32xf32>, vector<8x32xf32>, vector<8x32xf32>, vector<8x32xf32> -> vector<88x32xf32>
    %c0_22 = arith.constant 0 : index
    %c0_23 = arith.constant 0 : index
    %23 = vector.load %arg2[%c0_22, %c0_23] : memref<16x88xf32, #tpu.memory_space<vmem>>, vector<16x88xf32>
    %cst = arith.constant dense<0.000000e+00> : vector<16x32xf32>
    %24 = tpu.matmul %23, %22, %cst {dimension_numbers = #tpu.dot_dimension_numbers<[1], [0], [0], [1], [0, 0, 1, 1], [], []>} : vector<16x88xf32>, vector<88x32xf32>, vector<16x32xf32> -> vector<16x32xf32>
    %c0_24 = arith.constant 0 : index
    %c0_25 = arith.constant 0 : index
    %25 = vector.load %arg3[%c0_24, %c0_25] : memref<16x16xf32, #tpu.memory_space<vmem>>, vector<16x16xf32>
    %cst_26 = arith.constant dense<0.000000e+00> : vector<16x32xf32>
    %26 = tpu.matmul %25, %24, %cst_26 {dimension_numbers = #tpu.dot_dimension_numbers<[1], [0], [0], [1], [0, 0, 1, 1], [], []>} : vector<16x16xf32>, vector<16x32xf32>, vector<16x32xf32> -> vector<16x32xf32>
    %c0_27 = arith.constant 0 : index
    %c0_28 = arith.constant 0 : index
    %27 = vector.load %arg4[%c0_27, %c0_28] : memref<16x1xf32, #tpu.memory_space<vmem>>, vector<16x1xf32>
    %28 = vector.broadcast %27 : vector<16x1xf32> to vector<16x32xf32>
    %29 = arith.addf %26, %28 : vector<16x32xf32>
    %30 = vector.shape_cast %29 : vector<16x32xf32> to vector<1x16x32xf32>
    %c0_29 = arith.constant 0 : index
    %c0_30 = arith.constant 0 : index
    %c0_31 = arith.constant 0 : index
    %31 = vector.load %arg5[%c0_29, %c0_30, %c0_31] : memref<1x16x32xf32, #tpu.memory_space<vmem>>, vector<1x16x32xf32>
    tpu.vector_store %arg5[%c0_29, %c0_30, %c0_31], %30 {strides = array<i32>} : memref<1x16x32xf32, #tpu.memory_space<vmem>>, vector<1x16x32xf32>,
    %cst_32 = arith.constant dense<0.000000e+00> : vector<16xf32>
    %32 = vector.multi_reduction <add>, %29, %cst_32 [1] : vector<16x32xf32> to vector<16xf32>
    %33 = vector.shape_cast %32 : vector<16xf32> to vector<16x1xf32>
    %34 = arith.mulf %29, %29 : vector<16x32xf32>
    %cst_33 = arith.constant dense<0.000000e+00> : vector<16xf32>
    %35 = vector.multi_reduction <add>, %34, %cst_33 [1] : vector<16x32xf32> to vector<16xf32>
    %36 = vector.shape_cast %35 : vector<16xf32> to vector<16x1xf32>
    %37 = tpu.concatenate %33, %36 in 1 : vector<16x1xf32>, vector<16x1xf32> -> vector<16x2xf32>
    %38 = vector.shape_cast %37 : vector<16x2xf32> to vector<1x16x2xf32>
    %c0_34 = arith.constant 0 : index
    %c0_35 = arith.constant 0 : index
    %c0_36 = arith.constant 0 : index
    %39 = vector.load %arg6[%c0_34, %c0_35, %c0_36] : memref<1x16x2xf32, #tpu.memory_space<vmem>>, vector<1x16x2xf32>
    tpu.vector_store %arg6[%c0_34, %c0_35, %c0_36], %38 {strides = array<i32>} : memref<1x16x2xf32, #tpu.memory_space<vmem>>, vector<1x16x2xf32>,
    return
  }
  func.func @transform_0(%arg0: i32) -> (i32, i32, i32) {
    %c0_i32 = arith.constant 0 : i32
    %c0_i32_0 = arith.constant 0 : i32
    %c0_i32_1 = arith.constant 0 : i32
    return %arg0, %c0_i32, %c0_i32_0 : i32, i32, i32
  }
  func.func @transform_1(%arg0: i32) -> (i32, i32) {
    %c0_i32 = arith.constant 0 : i32
    %c0_i32_0 = arith.constant 0 : i32
    %c0_i32_1 = arith.constant 0 : i32
    return %c0_i32, %c0_i32_0 : i32, i32
  }
  func.func @transform_2(%arg0: i32) -> (i32, i32) {
    %c0_i32 = arith.constant 0 : i32
    %c0_i32_0 = arith.constant 0 : i32
    %c0_i32_1 = arith.constant 0 : i32
    return %c0_i32, %c0_i32_0 : i32, i32
  }
  func.func @transform_3(%arg0: i32) -> (i32, i32) {
    %c0_i32 = arith.constant 0 : i32
    %c0_i32_0 = arith.constant 0 : i32
    %c0_i32_1 = arith.constant 0 : i32
    return %c0_i32, %c0_i32_0 : i32, i32
  }
  func.func @transform_4(%arg0: i32) -> (i32, i32, i32) {
    %c0_i32 = arith.constant 0 : i32
    %c0_i32_0 = arith.constant 0 : i32
    %c0_i32_1 = arith.constant 0 : i32
    return %arg0, %c0_i32, %c0_i32_0 : i32, i32, i32
  }
  func.func @transform_5(%arg0: i32) -> (i32, i32, i32) {
    %c0_i32 = arith.constant 0 : i32
    %c0_i32_0 = arith.constant 0 : i32
    %c0_i32_1 = arith.constant 0 : i32
    return %arg0, %c0_i32, %c0_i32_0 : i32, i32, i32
  }
}

</mosaic_0001>

<llo_original>
// kernel: tpu_custom_call.1
$region0: #{tpu_custom_call.1}
  #allocation0 [shape = 'u32[]', space=smem, size = 0x4, offset = 0x4, fixed_abs, tag = 'smem constant byte address 0x4 - core index']
  #allocation1 [shape = 'u32[72,128]{1,0:T(1,128)}', space=vmem, size = 0x9000, scoped, tag = 'internal scratch']
  %s0 = inlined_call_operand.vmem [shape: f32[2,8,42], index: 0, kind: input, shape index: {}]
  %s1 = inlined_call_operand.hbm [shape: f32[16,88], index: 1, kind: input, shape index: {}]
  %s2 = inlined_call_operand.hbm [shape: f32[16,16], index: 2, kind: input, shape index: {}]
  %s3 = inlined_call_operand.vmem [shape: f32[16,1], index: 3, kind: input, shape index: {}]
  %s4 = inlined_call_operand.hbm [shape: f32[2,16,32], index: 4, kind: output, shape index: {0}]
  %s5 = inlined_call_operand.vmem [shape: f32[2,16,2], index: 5, kind: output, shape index: {1}]
  %6 = xla_tuple %s4, %s5
  %s7 = sld [smem:[#allocation0]]
  $region65: #{tpu_custom_call.1} parent=0
    _
  %s9 = ssub.s32 1, %s7
  %s10 = scalar_select 0, %s9, %s7
  $region1: #{tpu_custom_call.1} parent=0
    #allocation2 [shape = 'u8[8192]{0}', space=vmem, size = 0x2000, scoped, tag = 'input window, operand 1, single buffered']
    #allocation3 [shape = 's32[2]{0}', space=sflag, size = 0x8, scoped, tag = 'scoped memory for tpu_custom_call.1']
    #allocation4 [shape = 's32[2]{0}', space=sflag, size = 0x8, scoped, tag = 'scoped memory for tpu_custom_call.1']
    #allocation5 [shape = 'u8[8192]{0}', space=vmem, size = 0x2000, scoped, tag = 'input window, operand 2, single buffered']
    #allocation6 [shape = 's32[1]{0}', space=sflag, size = 0x4, scoped, tag = 'scoped memory for tpu_custom_call.1']
    #allocation7 [shape = 'u8[16384]{0}', space=vmem, size = 0x4000, scoped, tag = 'output window, operand 0']
    %11 = vsyncpa [#allocation3], 0
    %12 = vsyncpa [#allocation6], 0
    %13 = vsyncpa [#allocation4], 0
    %s14 = scalar_lea.sflag [#allocation4], 1
    %15 = vsyncpa %s14, 0
    loop: start=0, step=1, limit=4
    $region2: #{tpu_custom_call.1} parent=1 // loop_pre_header
      _
    $region3: #{tpu_custom_call.1} parent=1 // loop_header
      %s17 = sphi 0, %s21
      %p18 = scmp.ge.s32.totalorder %s17, 4
      %s27 = sphi 0, %s29
      %s30 = sphi 0, %s27
      %s31 = sphi 0, %s30
      %s47 = sphi 0, %s31
      %s51 = sphi 0, %s51
      %s53 = sphi 0, %s51
      %s54 = sphi 0, %s53
      %s68 = sphi 0, %s54
      %s72 = sphi 0, %s72
      %s74 = sphi 0, %s72
      %s75 = sphi 0, %s74
      %s89 = sphi 0, %s75
      %s93 = sphi 0, %s93
      %s95 = sphi 0, %s93
      %s96 = sphi 0, %s95
      %s110 = sphi 0, %s96
      %s116 = sphi 0, %s118
      %s119 = sphi 0, %s116
      %s120 = sphi 0, %s119
      %s136 = sphi 0, %s120
      %s142 = sphi 0, %s144
      %s145 = sphi 0, %s142
      %s146 = sphi 0, %s145
      %s162 = sphi 0, %s146
    $region4: #{tpu_custom_call.1} parent=1 // loop_header_branch
      %20 = sbr.rel (%p18) target = $region8
    $region5: #{tpu_custom_call.1} parent=1 // loop_body
      %s22 = ssub.s32 %s17, 1
      %s23 = ssub.s32 %s17, 2
      %s24 = sadd.s32 %s17, 1
      %s25 = ssub.s32 %s17, %s24
      %p26 = scmp.eq.s32.totalorder %s25, 0
      %s28 = sadd.s32 %s27, 1
      %s29 = scalar_select %p26, %s27, %s28
      %p32 = pneg %p26
      %p33 = scmp.eq.s32.totalorder %s17, 1
      %p34 = por %p32, %p33
      %p35 = scmp.ne.s32.totalorder %s27, %s30
      %p36 = scmp.eq.s32.totalorder %s17, 0
      %p37 = por %p35, %p36
      %p38 = scmp.ne.s32.totalorder %s27, %s30
      %p39 = scmp.eq.s32.totalorder %s22, 1
      %p40 = por %p38, %p39
      %p41 = scmp.ne.s32.totalorder %s30, %s31
      %p42 = scmp.eq.s32.totalorder %s22, 0
      %p43 = por %p41, %p42
      %p44 = scmp.ne.s32.totalorder %s30, %s31
      %p45 = scmp.eq.s32.totalorder %s23, 1
      %p46 = por %p44, %p45
      %p48 = scmp.ne.s32.totalorder %s31, %s47
      %p49 = scmp.eq.s32.totalorder %s23, 0
      %p50 = por %p48, %p49
      %s52 = sadd.s32 %s51, 1
      %p55 = scmp.eq.s32.totalorder %s17, 1
      %p56 = scmp.ne.s32.totalorder %s51, %s53
      %p57 = scmp.eq.s32.totalorder %s17, 0
      %p58 = por %p56, %p57
      %p59 = scmp.ne.s32.totalorder %s51, %s53
      %p60 = scmp.eq.s32.totalorder %s22, 1
      %p61 = por %p59, %p60
      %p62 = scmp.ne.s32.totalorder %s53, %s54
      %p63 = scmp.eq.s32.totalorder %s22, 0
      %p64 = por %p62, %p63
      %p65 = scmp.ne.s32.totalorder %s53, %s54
      %p66 = scmp.eq.s32.totalorder %s23, 1
      %p67 = por %p65, %p66
      %p69 = scmp.ne.s32.totalorder %s54, %s68
      %p70 = scmp.eq.s32.totalorder %s23, 0
      %p71 = por %p69, %p70
      %s73 = sadd.s32 %s72, 1
      %p76 = scmp.eq.s32.totalorder %s17, 1
      %p77 = scmp.ne.s32.totalorder %s72, %s74
      %p78 = scmp.eq.s32.totalorder %s17, 0
      %p79 = por %p77, %p78
      %p80 = scmp.ne.s32.totalorder %s72, %s74
      %p81 = scmp.eq.s32.totalorder %s22, 1
      %p82 = por %p80, %p81
      %p83 = scmp.ne.s32.totalorder %s74, %s75
      %p84 = scmp.eq.s32.totalorder %s22, 0
      %p85 = por %p83, %p84
      %p86 = scmp.ne.s32.totalorder %s74, %s75
      %p87 = scmp.eq.s32.totalorder %s23, 1
      %p88 = por %p86, %p87
      %p90 = scmp.ne.s32.totalorder %s75, %s89
      %p91 = scmp.eq.s32.totalorder %s23, 0
      %p92 = por %p90, %p91
      %s94 = sadd.s32 %s93, 1
      %p97 = scmp.eq.s32.totalorder %s17, 1
      %p98 = scmp.ne.s32.totalorder %s93, %s95
      %p99 = scmp.eq.s32.totalorder %s17, 0
      %p100 = por %p98, %p99
      %p101 = scmp.ne.s32.totalorder %s93, %s95
      %p102 = scmp.eq.s32.totalorder %s22, 1
      %p103 = por %p101, %p102
      %p104 = scmp.ne.s32.totalorder %s95, %s96
      %p105 = scmp.eq.s32.totalorder %s22, 0
      %p106 = por %p104, %p105
      %p107 = scmp.ne.s32.totalorder %s95, %s96
      %p108 = scmp.eq.s32.totalorder %s23, 1
      %p109 = por %p107, %p108
      %p111 = scmp.ne.s32.totalorder %s96, %s110
      %p112 = scmp.eq.s32.totalorder %s23, 0
      %p113 = por %p111, %p112
      %s114 = ssub.s32 %s17, %s24
      %p115 = scmp.eq.s32.totalorder %s114, 0
      %s117 = sadd.s32 %s116, 1
      %s118 = scalar_select %p115, %s116, %s117
      %p121 = pneg %p115
      %p122 = scmp.eq.s32.totalorder %s17, 1
      %p123 = por %p121, %p122
      %p124 = scmp.ne.s32.totalorder %s116, %s119
      %p125 = scmp.eq.s32.totalorder %s17, 0
      %p126 = por %p124, %p125
      %p127 = scmp.ne.s32.totalorder %s116, %s119
      %p128 = scmp.eq.s32.totalorder %s22, 1
      %p129 = por %p127, %p128
      %p130 = scmp.ne.s32.totalorder %s119, %s120
      %p131 = scmp.eq.s32.totalorder %s22, 0
      %p132 = por %p130, %p131
      %p133 = scmp.ne.s32.totalorder %s119, %s120
      %p134 = scmp.eq.s32.totalorder %s23, 1
      %p135 = por %p133, %p134
      %p137 = scmp.ne.s32.totalorder %s120, %s136
      %p138 = scmp.eq.s32.totalorder %s23, 0
      %p139 = por %p137, %p138
      %s140 = ssub.s32 %s17, %s24
      %p141 = scmp.eq.s32.totalorder %s140, 0
      %s143 = sadd.s32 %s142, 1
      %s144 = scalar_select %p141, %s142, %s143
      %p147 = pneg %p141
      %p148 = scmp.eq.s32.totalorder %s17, 1
      %p149 = por %p147, %p148
      %p150 = scmp.ne.s32.totalorder %s142, %s145
      %p151 = scmp.eq.s32.totalorder %s17, 0
      %p152 = por %p150, %p151
      %p153 = scmp.ne.s32.totalorder %s142, %s145
      %p154 = scmp.eq.s32.totalorder %s22, 1
      %p155 = por %p153, %p154
      %p156 = scmp.ne.s32.totalorder %s145, %s146
      %p157 = scmp.eq.s32.totalorder %s22, 0
      %p158 = por %p156, %p157
      %p159 = scmp.ne.s32.totalorder %s145, %s146
      %p160 = scmp.eq.s32.totalorder %s23, 1
      %p161 = por %p159, %p160
      %p163 = scmp.ne.s32.totalorder %s146, %s162
      %p164 = scmp.eq.s32.totalorder %s23, 0
      %p165 = por %p163, %p164
      %p166 = scmp.le.s32.totalorder 1, %s17
      %p167 = scmp.lt.s32.totalorder %s17, 3
      %p168 = pnand %p166, %p167
      %p169 = pneg %p168
      // Predicated region
      $region9: #{tpu_custom_call.1} parent=5 // pred_check
        _
      $region10: #{tpu_custom_call.1} parent=5 // pred_check_branch
        %171 = sbr.rel (%p168) target = $region12
      $region11: #{tpu_custom_call.1} parent=5 // pred_region
        %s172 = ssub.s32 %s17, 1
        // Predicated region
        $region13: #{tpu_custom_call.1} parent=11 // pred_check
          %p173 = pneg %p64
        $region14: #{tpu_custom_call.1} parent=11 // pred_check_branch
          %175 = sbr.rel (%p173) target = $region16
        $region15: #{tpu_custom_call.1} parent=11 // pred_region
          %177 = vsyncadd [#allocation3], 0
          %s178 = sshll.u32 %s1, 4
          %s179 = int_to_ptr.hbm [resolvable:$true] %s178
          %s180 = sshll.u32 [#allocation2], 4
          %s181 = int_to_ptr.vmem [resolvable:$true] %s180
          %186 = dma.hbm_to_vmem [thread:$0]  %s179, 256, %s181, [#allocation3], 128, 128, 8
        $region16: #{tpu_custom_call.1} parent=11 // pred_fallthru
          _
        // Predicated region
        $region17: #{tpu_custom_call.1} parent=11 // pred_check
          %p187 = pneg %p85
        $region18: #{tpu_custom_call.1} parent=11 // pred_check_branch
          %189 = sbr.rel (%p187) target = $region20
        $region19: #{tpu_custom_call.1} parent=11 // pred_region
          %191 = vsyncadd [#allocation6], 0
          %s192 = sshll.u32 %s2, 4
          %s193 = int_to_ptr.hbm [resolvable:$true] %s192
          %s194 = sshll.u32 [#allocation5], 4
          %s195 = int_to_ptr.vmem [resolvable:$true] %s194
          %200 = dma.hbm_to_vmem [thread:$0]  %s193, 256, %s195, [#allocation6], 128, 128, 8
        $region20: #{tpu_custom_call.1} parent=11 // pred_fallthru
          _
        // Predicated region
        $region21: #{tpu_custom_call.1} parent=11 // pred_check
          %p201 = pneg %p106
        $region22: #{tpu_custom_call.1} parent=11 // pred_check_branch
          %203 = sbr.rel (%p201) target = $region24
        $region23: #{tpu_custom_call.1} parent=11 // pred_region
          _
        $region24: #{tpu_custom_call.1} parent=11 // pred_fallthru
          _
      $region12: #{tpu_custom_call.1} parent=5 // pred_fallthru
        _
      %p204 = scmp.lt.s32.totalorder %s17, 2
      // Predicated region
      $region25: #{tpu_custom_call.1} parent=5 // pred_check
        %p205 = pneg %p204
      $region26: #{tpu_custom_call.1} parent=5 // pred_check_branch
        %207 = sbr.rel (%p205) target = $region28
      $region27: #{tpu_custom_call.1} parent=5 // pred_region
        // Predicated region
        $region29: #{tpu_custom_call.1} parent=27 // pred_check
          %p208 = pneg %p37
        $region30: #{tpu_custom_call.1} parent=27 // pred_check_branch
          %210 = sbr.rel (%p208) target = $region32
        $region31: #{tpu_custom_call.1} parent=27 // pred_region
          %p211 = scmp.lt.s32.totalorder %s17, 1
          %s212 = scalar_select %p211, %s17, 1
          %s213 = smul.addr %s212, 8
          %s214 = scalar_lea.vmem %s0, %s213
        $region32: #{tpu_custom_call.1} parent=27 // pred_fallthru
          _
      $region28: #{tpu_custom_call.1} parent=5 // pred_fallthru
        _
      %p215 = scmp.le.s32.totalorder 1, %s17
      %p216 = scmp.lt.s32.totalorder %s17, 3
      %p217 = pnand %p215, %p216
      %p218 = pneg %p217
      // Predicated region
      $region33: #{tpu_custom_call.1} parent=5 // pred_check
        _
      $region34: #{tpu_custom_call.1} parent=5 // pred_check_branch
        %220 = sbr.rel (%p217) target = $region36
      $region35: #{tpu_custom_call.1} parent=5 // pred_region
        %s221 = ssub.s32 %s17, 1
        // Predicated region
        $region37: #{tpu_custom_call.1} parent=35 // pred_check
          %p222 = pneg %p64
        $region38: #{tpu_custom_call.1} parent=35 // pred_check_branch
          %224 = sbr.rel (%p222) target = $region40
        $region39: #{tpu_custom_call.1} parent=35 // pred_region
          %226 = dma.done [#allocation3], 256
        $region40: #{tpu_custom_call.1} parent=35 // pred_fallthru
          _
        // Predicated region
        $region41: #{tpu_custom_call.1} parent=35 // pred_check
          %p227 = pneg %p85
        $region42: #{tpu_custom_call.1} parent=35 // pred_check_branch
          %229 = sbr.rel (%p227) target = $region44
        $region43: #{tpu_custom_call.1} parent=35 // pred_region
          %231 = dma.done [#allocation6], 256
        $region44: #{tpu_custom_call.1} parent=35 // pred_fallthru
          _
        %p232 = scmp.lt.s32.totalorder %s22, 1
        %s233 = scalar_select %p232, %s22, 1
        %s234 = smul.addr %s233, 8
        %s235 = scalar_lea.vmem %s0, %s234
        %p236 = pneg %p43
        %p237 = pneg %p40
        %p238 = pneg %p64
        %p239 = pneg %p61
        %p240 = pneg %p85
        %p241 = pneg %p82
        %p242 = pneg %p106
        %p243 = pneg %p103
        %p244 = pneg %p132
        %p245 = pneg %p129
        %s246 = sand.u32 %s119, 1
        %s247 = scalar_lea.sflag [#allocation4], %s246
        %s248 = sand.u32 %s119, 1
        %s249 = smul.addr %s248, 16
        %s250 = scalar_lea.vmem [#allocation7], %s249
        %p251 = pneg %p158
        %p252 = pneg %p155
        %p253 = scmp.lt.s32.totalorder %s22, 1
        %s254 = scalar_select %p253, %s22, 1
        %s255 = smul.addr %s254, 2
        %s256 = smul.addr %s255, 8
        %s257 = scalar_lea.vmem %s5, %s256
        %p258 = scmp.lt.s32.totalorder %s22, 1
        %s259 = scalar_select %p258, %s22, 1
        %s260 = smul.addr %s259, 8
        %s261 = scalar_lea.vmem %s0, %s260
        %p262 = scmp.lt.s32.totalorder %s22, 1
        %s263 = scalar_select %p262, %s22, 1
        %s264 = smul.addr %s263, 2
        %s265 = smul.addr %s264, 8
        %s266 = scalar_lea.vmem %s5, %s265
        %v267 = vld [vmem:[%s261] sm:$0xff]
        %269 = vrot.lane.b32.xlu0 %v267, 127
        %v270 = vpop.permute.xlu0 %269
        %272 = vrot.lane.b32.xlu0 %v267, 126
        %v273 = vpop.permute.xlu0 %272
        %275 = vrot.lane.b32.xlu0 %v267, 125
        %v276 = vpop.permute.xlu0 %275
        %278 = vrot.lane.b32.xlu0 %v267, 124
        %v279 = vpop.permute.xlu0 %278
        %281 = vrot.lane.b32.xlu0 %v267, 123
        %v282 = vpop.permute.xlu0 %281
        %284 = vrot.lane.b32.xlu0 %v267, 122
        %v285 = vpop.permute.xlu0 %284
        %287 = vrot.lane.b32.xlu0 %v267, 121
        %v288 = vpop.permute.xlu0 %287
        %290 = vrot.lane.b32.xlu0 %v267, 120
        %v291 = vpop.permute.xlu0 %290
        %293 = vrot.lane.b32.xlu0 %v267, 119
        %v294 = vpop.permute.xlu0 %293
        %296 = vrot.lane.b32.xlu0 %v267, 118
        %v297 = vpop.permute.xlu0 %296
        %v299 = vld [vmem:[#allocation2] sm:$0xff]
        %v300 = vld [vmem:[#allocation2 + $0x8] sm:$0xff]
        %vm301 = vcmask 719872
        %v303 = vsel %vm301, %v299, 0
        %v306 = vsel %vm301, %v300, 0
        %308 = vmatpush.msra.mxu0 0.0
        %309 = vmatpush.msra.mxu0 0.0
        %310 = vmatpush.msra.mxu0 0.0
        %311 = vmatpush.msra.mxu0 0.0
        %312 = vmatpush.msra.mxu0 0.0
        %313 = vmatpush.msra.mxu0 %v297
        %314 = vmatpush.msra.mxu0 %v294
        %315 = vmatpush.msra.mxu0 %v291
        %316 = vmatpush.msra.mxu0 %v288
        %317 = vmatpush.msra.mxu0 %v285
        %318 = vmatpush.msra.mxu0 %v282
        %319 = vmatpush.msra.mxu0 %v279
        %320 = vmatpush.msra.mxu0 %v276
        %321 = vmatpush.msra.mxu0 %v273
        %322 = vmatpush.msra.mxu0 %v270
        %323 = vmatpush.msra.mxu0 %v267
        %324 = vmatmul.f32.gmra.mxu0 %v303
        %v325 = vpop.f32.mrf.mxu0
        %v326 = vadd.f32 0.0, %v325
        %327 = vmatmul.f32.gmra.mxu0 %v306
        %v328 = vpop.f32.mrf.mxu0
        %v329 = vadd.f32 0.0, %v328
        %330 = vdwg.mxu0
        %v331 = vld [vmem:[#allocation5] sm:$0xff]
        %v332 = vld [vmem:[#allocation5 + $0x8] sm:$0xff]
        %v333 = vld [vmem:[%s3] sm:$0xff]
        %v334 = vld [vmem:[%s3 + $0x8] sm:$0xff]
        %336 = vset.pattern.permute.xlu0 0
        %337 = vperm.xlu0 %336, %v333
        %v338 = vpop.permute.xlu0 %337
        %341 = vset.pattern.permute.xlu0 0
        %342 = vperm.xlu0 %341, %v334
        %v343 = vpop.permute.xlu0 %342
        %vm345 = vcmask 130048
        %v347 = vsel %vm345, %v331, 0
        %v350 = vsel %vm345, %v332, 0
        %352 = vmatpush.msra.mxu0 0.0
        %353 = vmatpush.msra.mxu0 0.0
        %354 = vmatpush.msra.mxu0 0.0
        %355 = vmatpush.msra.mxu0 0.0
        %356 = vmatpush.msra.mxu0 0.0
        %357 = vmatpush.msra.mxu0 0.0
        %358 = vmatpush.msra.mxu0 0.0
        %359 = vmatpush.msra.mxu0 0.0
        %360 = vmatpush.msra.mxu0 0.0
        %361 = vmatpush.msra.mxu0 0.0
        %362 = vmatpush.msra.mxu0 0.0
        %363 = vmatpush.msra.mxu0 0.0
        %364 = vmatpush.msra.mxu0 0.0
        %365 = vmatpush.msra.mxu0 0.0
        %366 = vmatpush.msra.mxu0 %v329
        %367 = vmatpush.msra.mxu0 %v326
        %368 = vmatmul.f32.gmra.mxu0 %v347
        %v369 = vpop.f32.mrf.mxu0
        %v370 = vadd.f32 %v338, %v369
        %371 = vmatmul.f32.gmra.mxu0 %v350
        %v372 = vpop.f32.mrf.mxu0
        %v373 = vadd.f32 %v343, %v372
        %374 = vdwg.mxu0
        %vm375 = vcmask 261120
        %376 = vst.msk [vmem:[%s250] sm:$0xff] %vm375, %v370
        %377 = vst.msk [vmem:[%s250 + $0x8] sm:$0xff] %vm375, %v373
        %v378 = vsel %vm375, %v370, 0.0
        %379 = vadd.xlane.f32.xlu0 %v378
        %v380 = vpop.xlane.xlu0 %379
        %v381 = vsel %vm375, %v373, 0.0
        %382 = vadd.xlane.f32.xlu0 %v381
        %v383 = vpop.xlane.xlu0 %382
        %v384 = vmul.f32 %v370, %v370
        %v385 = vmul.f32 %v373, %v373
        %v386 = vsel %vm375, %v384, 0.0
        %387 = vadd.xlane.f32.xlu0 %v386
        %v388 = vpop.xlane.xlu0 %387
        %v389 = vsel %vm375, %v385, 0.0
        %390 = vadd.xlane.f32.xlu0 %v389
        %v391 = vpop.xlane.xlu0 %390
        %vm392 = vcmask 7168
        %v393 = vsel %vm392, %v380, %v388
        %v394 = vsel %vm392, %v383, %v391
        %vm395 = vcmask 15360
        %396 = vst.msk [vmem:[%s266] sm:$0xff] %vm395, %v393
        %397 = vst.msk [vmem:[%s266 + $0x8] sm:$0xff] %vm395, %v394
        %s398 = sand.u32 %s119, 1
        %s399 = scalar_lea.sflag [#allocation4], %s398
        %s400 = sand.u32 %s119, 1
        %s401 = smul.addr %s400, 16
        %s402 = scalar_lea.vmem [#allocation7], %s401
        %p403 = scmp.lt.s32.totalorder %s22, 1
        %s404 = scalar_select %p403, %s22, 1
        %s405 = smul.addr %s404, 2
        %s406 = smul.addr %s405, 8
        %s407 = scalar_lea.vmem %s5, %s406
        // Predicated region
        $region45: #{tpu_custom_call.1} parent=35 // pred_check
          %p408 = pneg %p129
        $region46: #{tpu_custom_call.1} parent=35 // pred_check_branch
          %410 = sbr.rel (%p408) target = $region48
        $region47: #{tpu_custom_call.1} parent=35 // pred_region
          %412 = vsyncadd %s399, 0
          %s413 = smul.addr %s22, 2
          %s414 = smul.addr %s413, 8
          %s415 = scalar_lea.hbm %s4, %s414
          %s416 = sshll.u32 %s402, 4
          %s417 = int_to_ptr.vmem [resolvable:$true] %s416
          %s418 = sshll.u32 %s415, 4
          %s419 = int_to_ptr.hbm [resolvable:$true] %s418
          %424 = dma.vmem_to_hbm [thread:$0]  %s417, 256, %s419, %s399, 128, 128, 8
        $region48: #{tpu_custom_call.1} parent=35 // pred_fallthru
          _
        // Predicated region
        $region49: #{tpu_custom_call.1} parent=35 // pred_check
          %p425 = pneg %p155
        $region50: #{tpu_custom_call.1} parent=35 // pred_check_branch
          %427 = sbr.rel (%p425) target = $region52
        $region51: #{tpu_custom_call.1} parent=35 // pred_region
          _
        $region52: #{tpu_custom_call.1} parent=35 // pred_fallthru
          _
      $region36: #{tpu_custom_call.1} parent=5 // pred_fallthru
        _
      %p428 = scmp.le.s32.totalorder 2, %s17
      // Predicated region
      $region53: #{tpu_custom_call.1} parent=5 // pred_check
        %p429 = pneg %p428
      $region54: #{tpu_custom_call.1} parent=5 // pred_check_branch
        %431 = sbr.rel (%p429) target = $region56
      $region55: #{tpu_custom_call.1} parent=5 // pred_region
        %s432 = ssub.s32 %s17, 2
        // Predicated region
        $region57: #{tpu_custom_call.1} parent=55 // pred_check
          %p433 = pneg %p135
        $region58: #{tpu_custom_call.1} parent=55 // pred_check_branch
          %435 = sbr.rel (%p433) target = $region60
        $region59: #{tpu_custom_call.1} parent=55 // pred_region
          %s436 = sand.u32 %s120, 1
          %s437 = scalar_lea.sflag [#allocation4], %s436
          %s438 = sand.u32 %s120, 1
          %s439 = smul.addr %s438, 16
          %s440 = scalar_lea.vmem [#allocation7], %s439
          %442 = dma.done %s437, 256
        $region60: #{tpu_custom_call.1} parent=55 // pred_fallthru
          _
        // Predicated region
        $region61: #{tpu_custom_call.1} parent=55 // pred_check
          %p443 = pneg %p161
        $region62: #{tpu_custom_call.1} parent=55 // pred_check_branch
          %445 = sbr.rel (%p443) target = $region64
        $region63: #{tpu_custom_call.1} parent=55 // pred_region
          %p446 = scmp.lt.s32.totalorder %s23, 1
          %s447 = scalar_select %p446, %s23, 1
          %s448 = smul.addr %s447, 2
          %s449 = smul.addr %s448, 8
          %s450 = scalar_lea.vmem %s5, %s449
        $region64: #{tpu_custom_call.1} parent=55 // pred_fallthru
          _
      $region56: #{tpu_custom_call.1} parent=5 // pred_fallthru
        _
    $region6: #{tpu_custom_call.1} parent=1 // loop_footer
      %s21 = sadd.s32 1, %s17
    $region7: #{tpu_custom_call.1} parent=1 // loop_footer_branch
      %16 = sbr.rel target = $region3
    $region8: #{tpu_custom_call.1} parent=1 // loop_exit
      _
    %451 = vsyncpa [#allocation3], 1
    %s452 = scalar_lea.sflag [#allocation3], 1
    %453 = vsyncpa %s452, 1
    %454 = vsyncpa [#allocation6], 1
    %455 = vsyncpa [#allocation4], 1
    %s456 = scalar_lea.sflag [#allocation4], 1
    %457 = vsyncpa %s456, 1

</llo_original>
